<compile_context>
chip_gen: v7x
topology: tpu7x:2x2x1
jax: 0.10.0
libtpu: 0.0.40
codegen_flags: <defaults>
</compile_context>

<pallas_src>
import functools
from typing import NamedTuple, Optional

import jax
import jax.numpy as jnp
from jax.experimental import pallas as pl
from jax.experimental.pallas import tpu as pltpu


# ----------------------------------------------------------------------------
# Helpers
# ----------------------------------------------------------------------------
def _round_up(x: int, m: int) -> int:
    return ((x + m - 1) // m) * m


def _chip_params():
    """Generation-aware tiling / VMEM parameters."""
    kind = ""
    try:
        kind = jax.devices()[0].device_kind.lower()
    except Exception:  # pragma: no cover - defensive
        pass
    mib = 1 << 20
    if "v7" in kind or "7x" in kind:
        # v7x: 64 MiB VMEM per TC, 2 TCs/chip, 2x256x256 MXU.
        return dict(align=256, ws_budget=44 * mib, vmem_limit=56 * mib,
                    two_cores=True)
    if "v6" in kind:
        # v6e: 128 MiB VMEM, 2x256x256 MXU.
        return dict(align=256, ws_budget=80 * mib, vmem_limit=100 * mib,
                    two_cores=False)
    if "v5 lite" in kind or "v5e" in kind or "v5lite" in kind:
        # v5e: 128 MiB VMEM (default scoped limit only 16 MiB -> must raise),
        # 4x128x128 MXU so 128-alignment suffices.
        return dict(align=128, ws_budget=80 * mib, vmem_limit=100 * mib,
                    two_cores=False)
    # Unknown / older generation: conservative defaults, leave scoped VMEM
    # limit at the compiler default.
    return dict(align=128, ws_budget=24 * mib, vmem_limit=None,
                two_cores=False)


def _tile_candidates(dim: int, align: int):
    """Candidate tile sizes (descending) for a dimension of size `dim`."""
    d128 = _round_up(dim, 128)
    cands = []
    for c in (2048, 1024, 512, 256, 128):
        if c > d128:
            continue
        # Prefer MXU-aligned tiles (multiples of `align`) unless the dim
        # itself is smaller than the alignment.
        if c % align != 0 and c != d128 and d128 > align:
            continue
        cands.append(c)
    # Full (128-padded) dim as a single tile avoids padding entirely.
    if d128 <= 2048 and d128 not in cands:
        cands.append(d128)
    if not cands:
        cands.append(d128)
    cands.sort(reverse=True)
    return cands


def _select_tiles(n, k, in_bytes, out_bytes, *, align, ws_budget, tm_budget,
                  prefer_split_n):
    """Pick (tn, tk): largest tiles whose double-buffered working set fits."""
    tn_cands = _tile_candidates(n, align)
    tk_cands = _tile_candidates(k, align)
    best, best_key = None, None
    for tn in tn_cands:
        for tk in tk_cands:
            ws = (2 * tm_budget * tk * in_bytes      # x tiles (double-buffered)
                  + 2 * tk * tn * in_bytes           # weight tiles
                  + 2 * tm_budget * tn * out_bytes   # output tiles
                  + tm_budget * tn * 4               # f32 accumulator
                  + 2 * 8 * tn * 4)                  # bias tile (sublane-padded)
            if ws > ws_budget:
                continue
            n_blocks = _round_up(_round_up(n, 128), tn) // tn
            # On v7x prefer >= 2 blocks along N so both TensorCores get work
            # even when the M grid collapses to a single block (decode).
            key = ((n_blocks >= 2) if prefer_split_n else True, tn * tk, tn)
            if best_key is None or key > best_key:
                best_key, best = key, (tn, tk)
    if best is None:  # always-fitting fallback (smallest candidates)
        best = (tn_cands[-1], tk_cands[-1])
    return best


# ----------------------------------------------------------------------------
# Kernels
# ----------------------------------------------------------------------------
def _matmul_kernel(x_ref, w_ref, o_ref, acc_ref):
    # x_ref: (tm, tk) activations; w_ref: (tk, tn) weight (MXU-native layout);
    # o_ref: (tm, tn); acc_ref: (tm, tn) f32, resident across the K grid axis.
    @pl.when(pl.program_id(2) == 0)
    def _():
        acc_ref[...] = jnp.zeros_like(acc_ref)

    acc_ref[...] += jnp.dot(x_ref[...], w_ref[...],
                            preferred_element_type=jnp.float32)

    @pl.when(pl.program_id(2) == pl.num_programs(2) - 1)
    def _():
        o_ref[...] = acc_ref[...].astype(o_ref.dtype)


def _matmul_bias_kernel(x_ref, w_ref, b_ref, o_ref, acc_ref):
    # Same as above with the bias add fused into the epilogue (f32, pre-cast).
    @pl.when(pl.program_id(2) == 0)
    def _():
        acc_ref[...] = jnp.zeros_like(acc_ref)

    acc_ref[...] += jnp.dot(x_ref[...], w_ref[...],
                            preferred_element_type=jnp.float32)

    @pl.when(pl.program_id(2) == pl.num_programs(2) - 1)
    def _():
        o_ref[...] = (acc_ref[...] + b_ref[...]).astype(o_ref.dtype)


# ----------------------------------------------------------------------------
# Wrapper
# ----------------------------------------------------------------------------
class _Config(NamedTuple):
    in_features: int
    out_features: int
    tn: int
    tk: int
    tm_max: int
    vmem_limit_bytes: Optional[int]


def _column_parallel_apply(x, w_t, b, *, cfg: _Config):
    n, k = cfg.out_features, cfg.in_features
    kp, np_ = w_t.shape
    tn, tk = cfg.tn, cfg.tk

    *lead, k_in = x.shape
    assert k_in == k, (k_in, k)
    x2 = x.reshape(-1, k)
    m = x2.shape[0]

    # M tile: sublane granularity 16 for sub-32-bit dtypes, 8 for f32.
    row_gran = 16 if jnp.dtype(x.dtype).itemsize < 4 else 8
    m_aligned = _round_up(m, row_gran)
    # Decode / small-M path: single M block -> weight streams exactly once.
    tm = m_aligned if m_aligned <= cfg.tm_max else cfg.tm_max
    mp = _round_up(m, tm)

    if (mp, kp) != (m, k):
        x2 = jnp.pad(x2, ((0, mp - m), (0, kp - k)))

    grid = (mp // tm, np_ // tn, kp // tk)

    in_specs = [
        pl.BlockSpec((tm, tk), lambda i, j, l: (i, l)),   # x tile
        pl.BlockSpec((tk, tn), lambda i, j, l: (l, j)),   # weight tile (K, N)
    ]
    operands = [x2, w_t]
    if b is not None:
        in_specs.append(pl.BlockSpec((1, tn), lambda i, j, l: (0, j)))
        operands.append(b)
        kernel = _matmul_bias_kernel
    else:
        kernel = _matmul_kernel

    out = pl.pallas_call(
        kernel,
        out_shape=jax.ShapeDtypeStruct((mp, np_), x.dtype),
        grid_spec=pltpu.PrefetchScalarGridSpec(
            num_scalar_prefetch=0,
            grid=grid,
            in_specs=in_specs,
            out_specs=pl.BlockSpec((tm, tn), lambda i, j, l: (i, j)),
            scratch_shapes=[pltpu.VMEM((tm, tn), jnp.float32)],
        ),
        compiler_params=pltpu.CompilerParams(
            dimension_semantics=("parallel", "parallel", "arbitrary"),
            vmem_limit_bytes=cfg.vmem_limit_bytes,
        ),
    )(*operands)

    y = out[:m, :n]  # no-op when N/M were not padded
    return y.reshape(*lead, n)


def make_column_parallel_linear(weight, bias=None, *, tm_max=512):
    """One-time setup (like module __init__): returns a jitted apply(x).

    weight: (out_features, in_features), typically bf16 (torch layout).
    bias:   optional (out_features,).
    """
    out_features, in_features = weight.shape
    tm_max = max(16, _round_up(tm_max, 16))
    chip = _chip_params()
    in_bytes = jnp.dtype(weight.dtype).itemsize
    out_bytes = in_bytes

    tn, tk = _select_tiles(
        out_features, in_features, in_bytes, out_bytes,
        align=chip["align"], ws_budget=chip["ws_budget"],
        tm_budget=tm_max, prefer_split_n=chip["two_cores"])

    kp = _round_up(in_features, tk)
    np_ = _round_up(out_features, tn)

    # One-time layout prep: (N, K) torch weight -> padded (K, N) rhs layout.
    # Done here (init), not per forward call.
    if (kp, np_) == (in_features, out_features):
        w_t = jnp.asarray(weight).T
    else:
        w_t = jnp.zeros((kp, np_), weight.dtype)
        w_t = w_t.at[:in_features, :out_features].set(jnp.asarray(weight).T)

    b_pad = None
    if bias is not None:
        b_pad = jnp.zeros((1, np_), jnp.float32)
        b_pad = b_pad.at[0, :out_features].set(
            jnp.asarray(bias).astype(jnp.float32))

    cfg = _Config(in_features=in_features, out_features=out_features,
                  tn=tn, tk=tk, tm_max=tm_max,
                  vmem_limit_bytes=chip["vmem_limit"])
    fn = jax.jit(functools.partial(_column_parallel_apply, cfg=cfg))

    def apply(x):
        return fn(x, w_t, b_pad)

    return apply


def column_parallel_linear(x, weight, bias=None, *, tm_max=512):
    """Convenience one-shot call: y = x @ weight.T (+ bias).

    NOTE: this re-does the one-time weight layout prep every call; in real use
    hoist it with make_column_parallel_linear().
    """
    return make_column_parallel_linear(weight, bias, tm_max=tm_max)(x)


# ----------------------------------------------------------------------------
# Self-test
# ----------------------------------------------------------------------------
if __name__ == "__main__":
    # Small shapes consistent with the module: x is (batch, seq, in_features),
    # weight is (out_features, in_features) bf16, world_size == 1 so
    # part_out_features == out_features.
    in_features, out_features = 256, 512
    batch, seq = 2, 8

    key = jax.random.PRNGKey(0)
    k_w, k_x, k_b = jax.random.split(key, 3)

    weight = (0.02 * jax.random.normal(
        k_w, (out_features, in_features), dtype=jnp.float32)).astype(jnp.bfloat16)
    x = jax.random.normal(
        k_x, (batch, seq, in_features), dtype=jnp.float32).astype(jnp.bfloat16)
    bias = 0.1 * jax.random.normal(k_b, (out_features,), dtype=jnp.float32)

    # Reference: plain-JAX linear with f32 accumulation.
    y_ref = jnp.einsum("bsk,nk->bsn",
                       x.astype(jnp.float32), weight.astype(jnp.float32))

    # No-bias path (module default: bias=False).
    fwd = make_column_parallel_linear(weight)
    y = jax.block_until_ready(fwd(x))
    assert y.shape == (batch, seq, out_features)
    assert y.dtype == x.dtype
    err = float(jnp.max(jnp.abs(y.astype(jnp.float32) - y_ref)))
    assert jnp.allclose(y.astype(jnp.float32), y_ref, atol=2e-2, rtol=2e-2), err

    # Fused-bias epilogue path.
    fwd_b = make_column_parallel_linear(weight, bias)
    yb = jax.block_until_ready(fwd_b(x))
    yb_ref = y_ref + bias[None, None, :]
    err_b = float(jnp.max(jnp.abs(yb.astype(jnp.float32) - yb_ref)))
    assert jnp.allclose(yb.astype(jnp.float32), yb_ref,
                        atol=2e-2, rtol=2e-2), err_b

    print("KERNEL_OK")
</pallas_src>

<mosaic_0001>
module attributes {stable_mosaic.version = 11 : i64} {
  func.func @_matmul_kernel(%arg0: i32, %arg1: i32, %arg2: i32, %arg3: memref<16x256xbf16, #tpu.memory_space<vmem>>, %arg4: memref<256x512xbf16, #tpu.memory_space<vmem>>, %arg5: memref<16x512xbf16, #tpu.memory_space<vmem>>, %arg6: memref<16x512xf32, #tpu.memory_space<vmem>>) attributes {dimension_semantics = [#tpu.dimension_semantics<parallel>, #tpu.dimension_semantics<parallel>, #tpu.dimension_semantics<arbitrary>], iteration_bounds = array<i64: 1, 1, 1>, scalar_prefetch = 0 : i64, scratch_operands = 1 : i64, tpu.core_type = #tpu.core_type<tc>, window_params = [{transform_indices = @transform_0, window_bounds = array<i64: 16, 256>}, {transform_indices = @transform_1, window_bounds = array<i64: 256, 512>}, {transform_indices = @transform_2, window_bounds = array<i64: 16, 512>}]} {
    %c0_i32 = arith.constant 0 : i32
    %0 = arith.cmpi eq, %arg2, %c0_i32 : i32
    %1 = arith.extui %0 : i1 to i32
    %c0_i32_0 = arith.constant 0 : i32
    %2 = arith.cmpi ne, %1, %c0_i32_0 : i32
    scf.if %2 {
      %cst_10 = arith.constant 0.000000e+00 : f32
      %12 = vector.broadcast %cst_10 : f32 to vector<16x512xf32>
      %c0_11 = arith.constant 0 : index
      %c0_12 = arith.constant 0 : index
      %13 = vector.load %arg6[%c0_11, %c0_12] : memref<16x512xf32, #tpu.memory_space<vmem>>, vector<16x512xf32>
      tpu.vector_store %arg6[%c0_11, %c0_12], %12 {strides = array<i32>} : memref<16x512xf32, #tpu.memory_space<vmem>>, vector<16x512xf32>,
    } else {
    }
    %c0 = arith.constant 0 : index
    %c0_1 = arith.constant 0 : index
    %3 = vector.load %arg6[%c0, %c0_1] : memref<16x512xf32, #tpu.memory_space<vmem>>, vector<16x512xf32>
    %c0_2 = arith.constant 0 : index
    %c0_3 = arith.constant 0 : index
    %4 = vector.load %arg3[%c0_2, %c0_3] : memref<16x256xbf16, #tpu.memory_space<vmem>>, vector<16x256xbf16>
    %c0_4 = arith.constant 0 : index
    %c0_5 = arith.constant 0 : index
    %5 = vector.load %arg4[%c0_4, %c0_5] : memref<256x512xbf16, #tpu.memory_space<vmem>>, vector<256x512xbf16>
    %cst = arith.constant dense<0.000000e+00> : vector<16x512xf32>
    %6 = tpu.matmul %4, %5, %cst {dimension_numbers = #tpu.dot_dimension_numbers<[1], [0], [0], [1], [0, 0, 1, 1], [], []>} : vector<16x256xbf16>, vector<256x512xbf16>, vector<16x512xf32> -> vector<16x512xf32>
    %7 = arith.addf %3, %6 : vector<16x512xf32>
    %c0_6 = arith.constant 0 : index
    %c0_7 = arith.constant 0 : index
    %8 = vector.load %arg6[%c0_6, %c0_7] : memref<16x512xf32, #tpu.memory_space<vmem>>, vector<16x512xf32>
    tpu.vector_store %arg6[%c0_6, %c0_7], %7 {strides = array<i32>} : memref<16x512xf32, #tpu.memory_space<vmem>>, vector<16x512xf32>,
    %c0_i32_8 = arith.constant 0 : i32
    %9 = arith.cmpi eq, %arg2, %c0_i32_8 : i32
    %10 = arith.extui %9 : i1 to i32
    %c0_i32_9 = arith.constant 0 : i32
    %11 = arith.cmpi ne, %10, %c0_i32_9 : i32
    scf.if %11 {
      %c0_10 = arith.constant 0 : index
      %c0_11 = arith.constant 0 : index
      %12 = vector.load %arg6[%c0_10, %c0_11] : memref<16x512xf32, #tpu.memory_space<vmem>>, vector<16x512xf32>
      %13 = arith.truncf %12 : vector<16x512xf32> to vector<16x512xbf16>
      %c0_12 = arith.constant 0 : index
      %c0_13 = arith.constant 0 : index
      %14 = vector.load %arg5[%c0_12, %c0_13] : memref<16x512xbf16, #tpu.memory_space<vmem>>, vector<16x512xbf16>
      tpu.vector_store %arg5[%c0_12, %c0_13], %13 {strides = array<i32>} : memref<16x512xbf16, #tpu.memory_space<vmem>>, vector<16x512xbf16>,
    } else {
    }
    return
  }
  func.func @transform_0(%arg0: i32, %arg1: i32, %arg2: i32) -> (i32, i32) {
    %c0_i32 = arith.constant 0 : i32
    return %arg0, %arg2 : i32, i32
  }
  func.func @transform_1(%arg0: i32, %arg1: i32, %arg2: i32) -> (i32, i32) {
    %c0_i32 = arith.constant 0 : i32
    return %arg2, %arg1 : i32, i32
  }
  func.func @transform_2(%arg0: i32, %arg1: i32, %arg2: i32) -> (i32, i32) {
    %c0_i32 = arith.constant 0 : i32
    return %arg0, %arg1 : i32, i32
  }
}

</mosaic_0001>

<llo_original>
// kernel: _column_parallel_apply.1
$region0: #{_column_parallel_apply.1}
  #allocation0 [shape = 'u32[]', space=smem, size = 0x4, offset = 0x4, fixed_abs, tag = 'smem constant byte address 0x4 - core index']
  #allocation1 [shape = 'u32[144,128]{1,0:T(1,128)}', space=vmem, size = 0x12000, scoped, tag = 'internal scratch']
  #allocation2 [shape = 'f32[16,512]{1,0:T(8,128)}', space=vmem, size = 0x8000, scoped, tag = 'scratch operand']
  %s0 = inlined_call_operand.hbm [shape: bf16[16,256], index: 0, kind: input, shape index: {}]
  %s1 = inlined_call_operand.hbm [shape: bf16[256,512], index: 1, kind: input, shape index: {}]
  %s2 = inlined_call_operand.hbm [shape: bf16[16,512], index: 2, kind: output, shape index: {}]
  %s3 = sld [smem:[#allocation0]]
  $region34: #{_column_parallel_apply.1} parent=0
    _
  %s5 = ssub.s32 1, %s3
  %s6 = scalar_select 0, %s5, %s3
  $region1: #{_column_parallel_apply.1} parent=0
    #allocation3 [shape = 'u8[8192]{0}', space=vmem, size = 0x2000, scoped, tag = 'input window, operand 0, single buffered']
    #allocation4 [shape = 's32[1]{0}', space=sflag, size = 0x4, scoped, tag = 'scoped memory for _column_parallel_apply.1']
    #allocation5 [shape = 's32[1]{0}', space=sflag, size = 0x4, scoped, tag = 'scoped memory for _column_parallel_apply.1']
    #allocation6 [shape = 'u8[262144]{0}', space=vmem, size = 0x40000, scoped, tag = 'input window, operand 1, single buffered']
    #allocation7 [shape = 's32[1]{0}', space=sflag, size = 0x4, scoped, tag = 'scoped memory for _column_parallel_apply.1']
    #allocation8 [shape = 'u8[16384]{0}', space=vmem, size = 0x4000, scoped, tag = 'output window, operand 0, single buffered']
    %7 = vsyncpa [#allocation4], 0
    %8 = vsyncpa [#allocation7], 0
    %9 = vsyncpa [#allocation5], 0
    // Predicated region
    $region2: #{_column_parallel_apply.1} parent=1 // pred_check
      _
    $region3: #{_column_parallel_apply.1} parent=1 // pred_check_branch
      %11 = sbr.rel (0) target = $region5
    $region4: #{_column_parallel_apply.1} parent=1 // pred_region
      %s13 = ssub.s32 256, 256
      %14 = vsyncadd [#allocation4], %s13
      %s15 = sshll.u32 [#allocation3], 4
      %s16 = int_to_ptr.vmem [resolvable:$true] %s15
      %21 = dma.hbm_to_vmem [thread:$0]  %s0, 256, %s16, [#allocation4], 128, 128, 8
    $region5: #{_column_parallel_apply.1} parent=1 // pred_fallthru
      _
    // Predicated region
    $region6: #{_column_parallel_apply.1} parent=1 // pred_check
      _
    $region7: #{_column_parallel_apply.1} parent=1 // pred_check_branch
      %23 = sbr.rel (0) target = $region9
    $region8: #{_column_parallel_apply.1} parent=1 // pred_region
      %s25 = ssub.s32 8192, 8192
      %26 = vsyncadd [#allocation7], %s25
      %s27 = sshll.u32 [#allocation6], 4
      %s28 = int_to_ptr.vmem [resolvable:$true] %s27
      %33 = dma.hbm_to_vmem [thread:$0]  %s1, 8192, %s28, [#allocation7], 256, 256, 16
    $region9: #{_column_parallel_apply.1} parent=1 // pred_fallthru
      _
    // Predicated region
    $region10: #{_column_parallel_apply.1} parent=1 // pred_check
      _
    $region11: #{_column_parallel_apply.1} parent=1 // pred_check_branch
      %35 = sbr.rel (0) target = $region13
    $region12: #{_column_parallel_apply.1} parent=1 // pred_region
      %36 = dma.done [#allocation4], 256
    $region13: #{_column_parallel_apply.1} parent=1 // pred_fallthru
      _
    // Predicated region
    $region14: #{_column_parallel_apply.1} parent=1 // pred_check
      _
    $region15: #{_column_parallel_apply.1} parent=1 // pred_check_branch
      %38 = sbr.rel (0) target = $region17
    $region16: #{_column_parallel_apply.1} parent=1 // pred_region
      %39 = dma.done [#allocation7], 8192
    $region17: #{_column_parallel_apply.1} parent=1 // pred_fallthru
      _
    %p40 = scmp.eq.s32.totalorder 0, 0
    // Predicated region
    $region18: #{_column_parallel_apply.1} parent=1 // pred_check
      %p41 = pneg %p40
    $region19: #{_column_parallel_apply.1} parent=1 // pred_check_branch
      %43 = sbr.rel (%p41) target = $region21
    $region20: #{_column_parallel_apply.1} parent=1 // pred_region
      %44 = vst [vmem:[#allocation2] sm:$0xff] 0.0
      %45 = vst [vmem:[#allocation2 + $0x8] sm:$0xff] 0.0
      %46 = vst [vmem:[#allocation2 + $0x10] sm:$0xff] 0.0
      %47 = vst [vmem:[#allocation2 + $0x18] sm:$0xff] 0.0
      %48 = vst [vmem:[#allocation2 + $0x20] sm:$0xff] 0.0
      %49 = vst [vmem:[#allocation2 + $0x28] sm:$0xff] 0.0
      %50 = vst [vmem:[#allocation2 + $0x30] sm:$0xff] 0.0
      %51 = vst [vmem:[#allocation2 + $0x38] sm:$0xff] 0.0
    $region21: #{_column_parallel_apply.1} parent=1 // pred_fallthru
      _
    %v52 = vld [vmem:[#allocation2] sm:$0xff]
    %v53 = vld [vmem:[#allocation2 + $0x8] sm:$0xff]
    %v54 = vld [vmem:[#allocation2 + $0x10] sm:$0xff]
    %v55 = vld [vmem:[#allocation2 + $0x18] sm:$0xff]
    %v56 = vld [vmem:[#allocation2 + $0x20] sm:$0xff]
    %v57 = vld [vmem:[#allocation2 + $0x28] sm:$0xff]
    %v58 = vld [vmem:[#allocation2 + $0x30] sm:$0xff]
    %v59 = vld [vmem:[#allocation2 + $0x38] sm:$0xff]
    %v60 = vld [vmem:[#allocation3] sm:$0xff]
    %v61 = vld [vmem:[#allocation3 + $0x8] sm:$0xff]
    %v62 = vld [vmem:[#allocation6] sm:$0xff]
    %v63 = vld [vmem:[#allocation6 + $0x8] sm:$0xff]
    %v64 = vld [vmem:[#allocation6 + $0x10] sm:$0xff]
    %v65 = vld [vmem:[#allocation6 + $0x18] sm:$0xff]
    %v66 = vld [vmem:[#allocation6 + $0x20] sm:$0xff]
    %v67 = vld [vmem:[#allocation6 + $0x28] sm:$0xff]
    %v68 = vld [vmem:[#allocation6 + $0x30] sm:$0xff]
    %v69 = vld [vmem:[#allocation6 + $0x38] sm:$0xff]
    %v70 = vld [vmem:[#allocation6 + $0x40] sm:$0xff]
    %v71 = vld [vmem:[#allocation6 + $0x48] sm:$0xff]
    %v72 = vld [vmem:[#allocation6 + $0x50] sm:$0xff]
    %v73 = vld [vmem:[#allocation6 + $0x58] sm:$0xff]
    %v74 = vld [vmem:[#allocation6 + $0x60] sm:$0xff]
    %v75 = vld [vmem:[#allocation6 + $0x68] sm:$0xff]
    %v76 = vld [vmem:[#allocation6 + $0x70] sm:$0xff]
    %v77 = vld [vmem:[#allocation6 + $0x78] sm:$0xff]
    %v78 = vld [vmem:[#allocation6 + $0x80] sm:$0xff]
    %v79 = vld [vmem:[#allocation6 + $0x88] sm:$0xff]
    %v80 = vld [vmem:[#allocation6 + $0x90] sm:$0xff]
    %v81 = vld [vmem:[#allocation6 + $0x98] sm:$0xff]
    %v82 = vld [vmem:[#allocation6 + $0xa0] sm:$0xff]
    %v83 = vld [vmem:[#allocation6 + $0xa8] sm:$0xff]
    %v84 = vld [vmem:[#allocation6 + $0xb0] sm:$0xff]
    %v85 = vld [vmem:[#allocation6 + $0xb8] sm:$0xff]
    %v86 = vld [vmem:[#allocation6 + $0xc0] sm:$0xff]
    %v87 = vld [vmem:[#allocation6 + $0xc8] sm:$0xff]
    %v88 = vld [vmem:[#allocation6 + $0xd0] sm:$0xff]
    %v89 = vld [vmem:[#allocation6 + $0xd8] sm:$0xff]
    %v90 = vld [vmem:[#allocation6 + $0xe0] sm:$0xff]
    %v91 = vld [vmem:[#allocation6 + $0xe8] sm:$0xff]
    %v92 = vld [vmem:[#allocation6 + $0xf0] sm:$0xff]
    %v93 = vld [vmem:[#allocation6 + $0xf8] sm:$0xff]
    %v94 = vld [vmem:[#allocation6 + $0x100] sm:$0xff]
    %v95 = vld [vmem:[#allocation6 + $0x108] sm:$0xff]
    %v96 = vld [vmem:[#allocation6 + $0x110] sm:$0xff]
    %v97 = vld [vmem:[#allocation6 + $0x118] sm:$0xff]
    %v98 = vld [vmem:[#allocation6 + $0x120] sm:$0xff]
    %v99 = vld [vmem:[#allocation6 + $0x128] sm:$0xff]
    %v100 = vld [vmem:[#allocation6 + $0x130] sm:$0xff]
    %v101 = vld [vmem:[#allocation6 + $0x138] sm:$0xff]
    %v102 = vld [vmem:[#allocation6 + $0x140] sm:$0xff]
    %v103 = vld [vmem:[#allocation6 + $0x148] sm:$0xff]
    %v104 = vld [vmem:[#allocation6 + $0x150] sm:$0xff]
    %v105 = vld [vmem:[#allocation6 + $0x158] sm:$0xff]
    %v106 = vld [vmem:[#allocation6 + $0x160] sm:$0xff]
    %v107 = vld [vmem:[#allocation6 + $0x168] sm:$0xff]
    %v108 = vld [vmem:[#allocation6 + $0x170] sm:$0xff]
    %v109 = vld [vmem:[#allocation6 + $0x178] sm:$0xff]
    %v110 = vld [vmem:[#allocation6 + $0x180] sm:$0xff]
    %v111 = vld [vmem:[#allocation6 + $0x188] sm:$0xff]
    %v112 = vld [vmem:[#allocation6 + $0x190] sm:$0xff]
    %v113 = vld [vmem:[#allocation6 + $0x198] sm:$0xff]
    %v114 = vld [vmem:[#allocation6 + $0x1a0] sm:$0xff]
    %v115 = vld [vmem:[#allocation6 + $0x1a8] sm:$0xff]
    %v116 = vld [vmem:[#allocation6 + $0x1b0] sm:$0xff]
    %v117 = vld [vmem:[#allocation6 + $0x1b8] sm:$0xff]
    %v118 = vld [vmem:[#allocation6 + $0x1c0] sm:$0xff]
    %v119 = vld [vmem:[#allocation6 + $0x1c8] sm:$0xff]
    %v120 = vld [vmem:[#allocation6 + $0x1d0] sm:$0xff]
    %v121 = vld [vmem:[#allocation6 + $0x1d8] sm:$0xff]
    %v122 = vld [vmem:[#allocation6 + $0x1e0] sm:$0xff]
    %v123 = vld [vmem:[#allocation6 + $0x1e8] sm:$0xff]
    %v124 = vld [vmem:[#allocation6 + $0x1f0] sm:$0xff]
    %v125 = vld [vmem:[#allocation6 + $0x1f8] sm:$0xff]
    %v128 = vunpack.c.l.b16 %v60
    %v129 = vunpack.c.h.b16 %v60
    %v130 = vunpack.c.l.b16 %v61
    %v131 = vunpack.c.h.b16 %v61
    %v132 = vpack.c.b16 %v130, %v128
    %v133 = vpack.c.b16 %v131, %v129
    %v200 = vunpack.c.l.b16 %v62
    %v201 = vunpack.c.h.b16 %v62
    %v202 = vunpack.c.l.b16 %v63
    %v203 = vunpack.c.h.b16 %v63
    %v204 = vunpack.c.l.b16 %v64
    %v205 = vunpack.c.h.b16 %v64
    %v206 = vunpack.c.l.b16 %v65
    %v207 = vunpack.c.h.b16 %v65
    %v208 = vunpack.c.l.b16 %v66
    %v209 = vunpack.c.h.b16 %v66
    %v210 = vunpack.c.l.b16 %v67
    %v211 = vunpack.c.h.b16 %v67
    %v212 = vunpack.c.l.b16 %v68
    %v213 = vunpack.c.h.b16 %v68
    %v214 = vunpack.c.l.b16 %v69
    %v215 = vunpack.c.h.b16 %v69
    %v216 = vunpack.c.l.b16 %v70
    %v217 = vunpack.c.h.b16 %v70
    %v218 = vunpack.c.l.b16 %v71
    %v219 = vunpack.c.h.b16 %v71
    %v220 = vunpack.c.l.b16 %v72
    %v221 = vunpack.c.h.b16 %v72
    %v222 = vunpack.c.l.b16 %v73
    %v223 = vunpack.c.h.b16 %v73
    %v224 = vunpack.c.l.b16 %v74
    %v225 = vunpack.c.h.b16 %v74
    %v226 = vunpack.c.l.b16 %v75
    %v227 = vunpack.c.h.b16 %v75
    %v228 = vunpack.c.l.b16 %v76
    %v229 = vunpack.c.h.b16 %v76
    %v230 = vunpack.c.l.b16 %v77
    %v231 = vunpack.c.h.b16 %v77
    %v232 = vunpack.c.l.b16 %v78
    %v233 = vunpack.c.h.b16 %v78
    %v234 = vunpack.c.l.b16 %v79
    %v235 = vunpack.c.h.b16 %v79
    %v236 = vunpack.c.l.b16 %v80
    %v237 = vunpack.c.h.b16 %v80
    %v238 = vunpack.c.l.b16 %v81
    %v239 = vunpack.c.h.b16 %v81
    %v240 = vunpack.c.l.b16 %v82
    %v241 = vunpack.c.h.b16 %v82
    %v242 = vunpack.c.l.b16 %v83
    %v243 = vunpack.c.h.b16 %v83
    %v244 = vunpack.c.l.b16 %v84
    %v245 = vunpack.c.h.b16 %v84
    %v246 = vunpack.c.l.b16 %v85
    %v247 = vunpack.c.h.b16 %v85
    %v248 = vunpack.c.l.b16 %v86
    %v249 = vunpack.c.h.b16 %v86
    %v250 = vunpack.c.l.b16 %v87
    %v251 = vunpack.c.h.b16 %v87
    %v252 = vunpack.c.l.b16 %v88
    %v253 = vunpack.c.h.b16 %v88
    %v254 = vunpack.c.l.b16 %v89
    %v255 = vunpack.c.h.b16 %v89
    %v256 = vunpack.c.l.b16 %v90
    %v257 = vunpack.c.h.b16 %v90
    %v258 = vunpack.c.l.b16 %v91
    %v259 = vunpack.c.h.b16 %v91
    %v260 = vunpack.c.l.b16 %v92
    %v261 = vunpack.c.h.b16 %v92
    %v262 = vunpack.c.l.b16 %v93
    %v263 = vunpack.c.h.b16 %v93
    %v264 = vunpack.c.l.b16 %v94
    %v265 = vunpack.c.h.b16 %v94
    %v266 = vunpack.c.l.b16 %v95
    %v267 = vunpack.c.h.b16 %v95
    %v268 = vunpack.c.l.b16 %v96
    %v269 = vunpack.c.h.b16 %v96
    %v270 = vunpack.c.l.b16 %v97
    %v271 = vunpack.c.h.b16 %v97
    %v272 = vunpack.c.l.b16 %v98
    %v273 = vunpack.c.h.b16 %v98
    %v274 = vunpack.c.l.b16 %v99
    %v275 = vunpack.c.h.b16 %v99
    %v276 = vunpack.c.l.b16 %v100
    %v277 = vunpack.c.h.b16 %v100
    %v278 = vunpack.c.l.b16 %v101
    %v279 = vunpack.c.h.b16 %v101
    %v280 = vunpack.c.l.b16 %v102
    %v281 = vunpack.c.h.b16 %v102
    %v282 = vunpack.c.l.b16 %v103
    %v283 = vunpack.c.h.b16 %v103
    %v284 = vunpack.c.l.b16 %v104
    %v285 = vunpack.c.h.b16 %v104
    %v286 = vunpack.c.l.b16 %v105
    %v287 = vunpack.c.h.b16 %v105
    %v288 = vunpack.c.l.b16 %v106
    %v289 = vunpack.c.h.b16 %v106
    %v290 = vunpack.c.l.b16 %v107
    %v291 = vunpack.c.h.b16 %v107
    %v292 = vunpack.c.l.b16 %v108
    %v293 = vunpack.c.h.b16 %v108
    %v294 = vunpack.c.l.b16 %v109
    %v295 = vunpack.c.h.b16 %v109
    %v296 = vunpack.c.l.b16 %v110
    %v297 = vunpack.c.h.b16 %v110
    %v298 = vunpack.c.l.b16 %v111
    %v299 = vunpack.c.h.b16 %v111
    %v300 = vunpack.c.l.b16 %v112
    %v301 = vunpack.c.h.b16 %v112
    %v302 = vunpack.c.l.b16 %v113
    %v303 = vunpack.c.h.b16 %v113
    %v304 = vunpack.c.l.b16 %v114
    %v305 = vunpack.c.h.b16 %v114
    %v306 = vunpack.c.l.b16 %v115
    %v307 = vunpack.c.h.b16 %v115
    %v308 = vunpack.c.l.b16 %v116
    %v309 = vunpack.c.h.b16 %v116
    %v310 = vunpack.c.l.b16 %v117
    %v311 = vunpack.c.h.b16 %v117
    %v312 = vunpack.c.l.b16 %v118
    %v313 = vunpack.c.h.b16 %v118
    %v314 = vunpack.c.l.b16 %v119
    %v315 = vunpack.c.h.b16 %v119
    %v316 = vunpack.c.l.b16 %v120
    %v317 = vunpack.c.h.b16 %v120
    %v318 = vunpack.c.l.b16 %v121
    %v319 = vunpack.c.h.b16 %v121
    %v320 = vunpack.c.l.b16 %v122
    %v321 = vunpack.c.h.b16 %v122
    %v322 = vunpack.c.l.b16 %v123
    %v323 = vunpack.c.h.b16 %v123
    %v324 = vunpack.c.l.b16 %v124
    %v325 = vunpack.c.h.b16 %v124
    %v326 = vunpack.c.l.b16 %v125
    %v327 = vunpack.c.h.b16 %v125
    %v328 = vpack.c.b16 %v204, %v200
    %v329 = vpack.c.b16 %v205, %v201
    %v330 = vpack.c.b16 %v206, %v202
    %v331 = vpack.c.b16 %v207, %v203
    %v332 = vpack.c.b16 %v212, %v208
    %v333 = vpack.c.b16 %v213, %v209
    %v334 = vpack.c.b16 %v214, %v210
    %v335 = vpack.c.b16 %v215, %v211
    %v336 = vpack.c.b16 %v220, %v216
    %v337 = vpack.c.b16 %v221, %v217
    %v338 = vpack.c.b16 %v222, %v218
    %v339 = vpack.c.b16 %v223, %v219
    %v340 = vpack.c.b16 %v228, %v224
    %v341 = vpack.c.b16 %v229, %v225
    %v342 = vpack.c.b16 %v230, %v226
    %v343 = vpack.c.b16 %v231, %v227
    %v344 = vpack.c.b16 %v236, %v232
    %v345 = vpack.c.b16 %v237, %v233
    %v346 = vpack.c.b16 %v238, %v234
    %v347 = vpack.c.b16 %v239, %v235
    %v348 = vpack.c.b16 %v244, %v240
    %v349 = vpack.c.b16 %v245, %v241
    %v350 = vpack.c.b16 %v246, %v242
    %v351 = vpack.c.b16 %v247, %v243
    %v352 = vpack.c.b16 %v252, %v248
    %v353 = vpack.c.b16 %v253, %v249
    %v354 = vpack.c.b16 %v254, %v250
    %v355 = vpack.c.b16 %v255, %v251
    %v356 = vpack.c.b16 %v260, %v256
    %v357 = vpack.c.b16 %v261, %v257
    %v358 = vpack.c.b16 %v262, %v258
    %v359 = vpack.c.b16 %v263, %v259
    %v360 = vpack.c.b16 %v268, %v264
    %v361 = vpack.c.b16 %v269, %v265
    %v362 = vpack.c.b16 %v270, %v266
    %v363 = vpack.c.b16 %v271, %v267
    %v364 = vpack.c.b16 %v276, %v272
    %v365 = vpack.c.b16 %v277, %v273
    %v366 = vpack.c.b16 %v278, %v274
    %v367 = vpack.c.b16 %v279, %v275
    %v368 = vpack.c.b16 %v284, %v280
    %v369 = vpack.c.b16 %v285, %v281
    %v370 = vpack.c.b16 %v286, %v282
    %v371 = vpack.c.b16 %v287, %v283
    %v372 = vpack.c.b16 %v292, %v288
    %v373 = vpack.c.b16 %v293, %v289
    %v374 = vpack.c.b16 %v294, %v290
    %v375 = vpack.c.b16 %v295, %v291
    %v376 = vpack.c.b16 %v300, %v296
    %v377 = vpack.c.b16 %v301, %v297
    %v378 = vpack.c.b16 %v302, %v298
    %v379 = vpack.c.b16 %v303, %v299
    %v380 = vpack.c.b16 %v308, %v304
    %v381 = vpack.c.b16 %v309, %v305
    %v382 = vpack.c.b16 %v310, %v306
    %v383 = vpack.c.b16 %v311, %v307
    %v384 = vpack.c.b16 %v316, %v312
    %v385 = vpack.c.b16 %v317, %v313
    %v386 = vpack.c.b16 %v318, %v314
    %v387 = vpack.c.b16 %v319, %v315
    %v388 = vpack.c.b16 %v324, %v320
    %v389 = vpack.c.b16 %v325, %v321
    %v390 = vpack.c.b16 %v326, %v322
    %v391 = vpack.c.b16 %v327, %v323
    %456 = vmatprep.subr.bf16.mxu0 %v329
    %457 = vmatpush1.bf16.msra.mxu0 %v328
    %458 = vmatprep.subr.bf16.mxu0 %v333
    %459 = vmatpush1.bf16.msra.mxu0 %v332
    %460 = vmatprep.subr.bf16.mxu0 %v337
    %461 = vmatpush1.bf16.msra.mxu0 %v336
    %462 = vmatprep.subr.bf16.mxu0 %v341
    %463 = vmatpush1.bf16.msra.mxu0 %v340
    %464 = vmatprep.subr.bf16.mxu0 %v345
    %465 = vmatpush1.bf16.msra.mxu0 %v344
    %466 = vmatprep.subr.bf16.mxu0 %v349
    %467 = vmatpush1.bf16.msra.mxu0 %v348
    %468 = vmatprep.subr.bf16.mxu0 %v353
    %469 = vmatpush1.bf16.msra.mxu0 %v352
    %470 = vmatprep.subr.bf16.mxu0 %v357
    %471 = vmatpush1.bf16.msra.mxu0 %v356
    %472 = vmatprep.subr.bf16.mxu0 %v361
    %473 = vmatpush1.bf16.msra.mxu0 %v360
    %474 = vmatprep.subr.bf16.mxu0 %v365
    %475 = vmatpush1.bf16.msra.mxu0 %v364
    %476 = vmatprep.subr.bf16.mxu0 %v369
    %477 = vmatpush1.bf16.msra.mxu0 %v368
    %478 = vmatprep.subr.bf16.mxu0 %v373
    %479 = vmatpush1.bf16.msra.mxu0 %v372
    %480 = vmatprep.subr.bf16.mxu0 %v377
    %481 = vmatpush1.bf16.msra.mxu0 %v376
    %482 = vmatprep.subr.bf16.mxu0 %v381
    %483 = vmatpush1.bf16.msra.mxu0 %v380
    %484 = vmatprep.subr.bf16.mxu0 %v385
    %485 = vmatpush1.bf16.msra.mxu0 %v384
    %486 = vmatprep.subr.bf16.mxu0 %v389
    %487 = vmatpush1.bf16.msra.mxu0 %v388
    %488 = vmatprep.mubr.bf16.mxu0 %v133
    %489 = vmatmul.mubr.bf16.gmra.mrb[0].mxu0 %v132
    %v490 = vpop.f32.mrb[0].mxu0
    %v491 = vadd.f32 0.0, %v490
    %v492 = vpop.f32.mrb[0].mxu0
    %v493 = vadd.f32 0.0, %v492
    %v494 = vpop.f32.mrb[0].mxu0
    %v495 = vadd.f32 0.0, %v494
    %v496 = vpop.f32.mrb[0].mxu0
    %v497 = vadd.f32 0.0, %v496
    %498 = vdwg.mxu0
    %499 = vmatprep.subr.bf16.mxu0 %v331
    %500 = vmatpush1.bf16.msra.mxu0 %v330
    %501 = vmatprep.subr.bf16.mxu0 %v335
    %502 = vmatpush1.bf16.msra.mxu0 %v334
    %503 = vmatprep.subr.bf16.mxu0 %v339
    %504 = vmatpush1.bf16.msra.mxu0 %v338
    %505 = vmatprep.subr.bf16.mxu0 %v343
    %506 = vmatpush1.bf16.msra.mxu0 %v342
    %507 = vmatprep.subr.bf16.mxu0 %v347
    %508 = vmatpush1.bf16.msra.mxu0 %v346
    %509 = vmatprep.subr.bf16.mxu0 %v351
    %510 = vmatpush1.bf16.msra.mxu0 %v350
    %511 = vmatprep.subr.bf16.mxu0 %v355
    %512 = vmatpush1.bf16.msra.mxu0 %v354
    %513 = vmatprep.subr.bf16.mxu0 %v359
    %514 = vmatpush1.bf16.msra.mxu0 %v358
    %515 = vmatprep.subr.bf16.mxu0 %v363
    %516 = vmatpush1.bf16.msra.mxu0 %v362
    %517 = vmatprep.subr.bf16.mxu0 %v367
    %518 = vmatpush1.bf16.msra.mxu0 %v366
    %519 = vmatprep.subr.bf16.mxu0 %v371
    %520 = vmatpush1.bf16.msra.mxu0 %v370
    %521 = vmatprep.subr.bf16.mxu0 %v375
    %522 = vmatpush1.bf16.msra.mxu0 %v374
    %523 = vmatprep.subr.bf16.mxu0 %v379
    %524 = vmatpush1.bf16.msra.mxu0 %v378
    %525 = vmatprep.subr.bf16.mxu0 %v383
    %526 = vmatpush1.bf16.msra.mxu0 %v382
    %527 = vmatprep.subr.bf16.mxu0 %v387
    %528 = vmatpush1.bf16.msra.mxu0 %v386
    %529 = vmatprep.subr.bf16.mxu0 %v391
    %530 = vmatpush1.bf16.msra.mxu0 %v390
    %531 = vmatprep.mubr.bf16.mxu0 %v133
    %532 = vmatmul.mubr.bf16.gmra.mrb[0].mxu0 %v132
    %v533 = vpop.f32.mrb[0].mxu0
    %v534 = vadd.f32 0.0, %v533
    %v535 = vpop.f32.mrb[0].mxu0
    %v536 = vadd.f32 0.0, %v535
    %v537 = vpop.f32.mrb[0].mxu0
    %v538 = vadd.f32 0.0, %v537
    %v539 = vpop.f32.mrb[0].mxu0
    %v540 = vadd.f32 0.0, %v539
    %541 = vdwg.mxu0
    %v542 = vadd.f32 %v52, %v491
    %v543 = vadd.f32 %v53, %v493
    %v544 = vadd.f32 %v54, %v534
    %v545 = vadd.f32 %v55, %v536
    %v546 = vadd.f32 %v56, %v495
    %v547 = vadd.f32 %v57, %v497
    %v548 = vadd.f32 %v58, %v538
    %v549 = vadd.f32 %v59, %v540
    %550 = vst [vmem:[#allocation2] sm:$0xff] %v542
    %551 = vst [vmem:[#allocation2 + $0x8] sm:$0xff] %v543
    %552 = vst [vmem:[#allocation2 + $0x10] sm:$0xff] %v544
    %553 = vst [vmem:[#allocation2 + $0x18] sm:$0xff] %v545
    %554 = vst [vmem:[#allocation2 + $0x20] sm:$0xff] %v546
    %555 = vst [vmem:[#allocation2 + $0x28] sm:$0xff] %v547
    %556 = vst [vmem:[#allocation2 + $0x30] sm:$0xff] %v548
    %557 = vst [vmem:[#allocation2 + $0x38] sm:$0xff] %v549
    // Predicated region
    $region22: #{_column_parallel_apply.1} parent=1 // pred_check
      %p558 = pneg %p40
    $region23: #{_column_parallel_apply.1} parent=1 // pred_check_branch
      %560 = sbr.rel (%p558) target = $region25
    $region24: #{_column_parallel_apply.1} parent=1 // pred_region
      %v561 = vld [vmem:[#allocation2] sm:$0xff]
      %v562 = vld [vmem:[#allocation2 + $0x8] sm:$0xff]
      %v563 = vld [vmem:[#allocation2 + $0x10] sm:$0xff]
      %v564 = vld [vmem:[#allocation2 + $0x18] sm:$0xff]
      %v565 = vld [vmem:[#allocation2 + $0x20] sm:$0xff]
      %v566 = vld [vmem:[#allocation2 + $0x28] sm:$0xff]
      %v567 = vld [vmem:[#allocation2 + $0x30] sm:$0xff]
      %v568 = vld [vmem:[#allocation2 + $0x38] sm:$0xff]
      %v569 = vpack.c.bf16 %v565, %v561
      %v570 = vpack.c.bf16 %v566, %v562
      %v571 = vpack.c.bf16 %v567, %v563
      %v572 = vpack.c.bf16 %v568, %v564
      %v577 = vunpack.c.l.b16 %v569
      %v578 = vunpack.c.l.b16 %v570
      %v579 = vunpack.c.l.b16 %v571
      %v580 = vunpack.c.l.b16 %v572
      %v581 = vunpack.c.h.b16 %v569
      %v582 = vunpack.c.h.b16 %v570
      %v583 = vunpack.c.h.b16 %v571
      %v584 = vunpack.c.h.b16 %v572
      %v585 = vpack.c.b16 %v578, %v577
      %v586 = vpack.c.b16 %v580, %v579
      %v587 = vpack.c.b16 %v582, %v581
      %v588 = vpack.c.b16 %v584, %v583
      %593 = vst [vmem:[#allocation8] sm:$0xff] %v585
      %594 = vst [vmem:[#allocation8 + $0x8] sm:$0xff] %v586
      %595 = vst [vmem:[#allocation8 + $0x10] sm:$0xff] %v587
      %596 = vst [vmem:[#allocation8 + $0x18] sm:$0xff] %v588
    $region25: #{_column_parallel_apply.1} parent=1 // pred_fallthru
      _
    // Predicated region
    $region26: #{_column_parallel_apply.1} parent=1 // pred_check
      _
    $region27: #{_column_parallel_apply.1} parent=1 // pred_check_branch
      %598 = sbr.rel (0) target = $region29
    $region28: #{_column_parallel_apply.1} parent=1 // pred_region
      %s600 = ssub.s32 512, 512
      %601 = vsyncadd [#allocation5], %s600
      %s602 = sshll.u32 [#allocation8], 4
      %s603 = int_to_ptr.vmem [resolvable:$true] %s602
      %608 = dma.vmem_to_hbm [thread:$0]  %s603, 512, %s2, [#allocation5], 256, 256, 16
    $region29: #{_column_parallel_apply.1} parent=1 // pred_fallthru
      _
    // Predicated region
    $region30: #{_column_parallel_apply.1} parent=1 // pred_check
      _
    $region31: #{_column_parallel_apply.1} parent=1 // pred_check_branch
      %610 = sbr.rel (0) target = $region33
    $region32: #{_column_parallel_apply.1} parent=1 // pred_region
      %611 = dma.done [#allocation5], 512
    $region33: #{_column_parallel_apply.1} parent=1 // pred_fallthru
      _
    %612 = vsyncpa [#allocation4], 1
    %613 = vsyncpa [#allocation7], 1
    %614 = vsyncpa [#allocation5], 1

</llo_original>
